<compile_context>
chip_gen: v7x
topology: tpu7x:2x2x1
jax: 0.10.0
libtpu: 0.0.40
codegen_flags: <defaults>
</compile_context>

<pallas_src>
import functools

import jax
import jax.numpy as jnp
from jax.experimental import pallas as pl
from jax.experimental.pallas import tpu as pltpu


def _nll_kernel(pi_ref, mu_ref, sigma_ref, y_ref, out_ref, ybc_ref, *,
                batch_size, n_comp, n_dim, split_passes, mask_rows):
    tb, kd = mu_ref.shape

    # ---- broadcast y across the K component slots (VMEM-only, log2(K) slice copies) --------
    # Doubling copies d -> 2d -> 4d ...; once `filled` hits a multiple of 128 (always the case
    # for power-of-two D) every later copy is a whole-128-lane (unmasked) copy.
    ybc_ref[:, 0:n_dim] = y_ref[...]
    filled = n_dim
    while filled < kd:                           # static trace-time loop
        w = min(filled, kd - filled)
        ybc_ref[:, filled:filled + w] = ybc_ref[:, 0:w]
        filled += w
    yb = ybc_ref[...].astype(jnp.float32)        # (tb, K*D), lane-dense

    mu = mu_ref[...].astype(jnp.float32)         # (tb, K*D)
    sg = sigma_ref[...].astype(jnp.float32)

    # Dense element-wise + EUP work (one reciprocal + one log per element).
    z = (yb - mu) / sg
    c = -0.5 * (z * z) - jnp.log(sg)             # (tb, K*D): quad + logdet terms

    valid = None
    if mask_rows:
        # Ragged last tile: zero padded rows before the MXU dot so uninitialised sigma
        # (possible 0/NaN/Inf) never enters the matmul or the partial sum.
        rows = pl.program_id(0) * tb + jax.lax.broadcasted_iota(jnp.int32, (tb, 1), 0)
        valid = rows < batch_size
        c = jnp.where(valid, c, 0.0)

    # ---- per-component reduction over D: explicit bf16 MXU matmuls vs. in-kernel selector ---
    # sel[i, j] = 1 iff i is one of component j's D lanes (exact 0/1, built with compares only).
    i_idx = jax.lax.broadcasted_iota(jnp.int32, (kd, n_comp), 0)
    j_idx = jax.lax.broadcasted_iota(jnp.int32, (kd, n_comp), 1)
    lo = j_idx * n_dim
    sel = jnp.where((i_idx >= lo) & (i_idx < lo + n_dim), 1.0, 0.0).astype(jnp.bfloat16)

    # bf16 operand split -> deterministic native MXU passes, f32 accumulation.
    c_hi = c.astype(jnp.bfloat16)
    r = c - c_hi.astype(jnp.float32)
    c_md = r.astype(jnp.bfloat16)
    red = (jnp.dot(c_hi, sel, preferred_element_type=jnp.float32)
           + jnp.dot(c_md, sel, preferred_element_type=jnp.float32))     # (tb, K)
    if split_passes >= 3:
        c_lo = (r - c_md.astype(jnp.float32)).astype(jnp.bfloat16)
        red = red + jnp.dot(c_lo, sel, preferred_element_type=jnp.float32)

    logits = pi_ref[...].astype(jnp.float32) + red                        # (tb, K)

    # ---- stable logsumexp over components ----------------------------------------------------
    m = jnp.max(logits, axis=-1, keepdims=True)
    lse = m + jnp.log(jnp.sum(jnp.exp(logits - m), axis=-1, keepdims=True))   # (tb, 1)

    if mask_rows:
        lse = jnp.where(valid, lse, 0.0)         # pi rows beyond batch are garbage -> mask
    out_ref[...] = jnp.full(out_ref.shape, jnp.sum(lse), dtype=out_ref.dtype)


def nll_loss(pi, mu, sigma, y, *, block_b=1024, split_passes=3):
    """Mean negative log-likelihood of a diagonal-Gaussian mixture (MDN NLLLoss forward).

    Computes in float32 on-chip.  Inputs are DMA'd in their own dtype (bf16 halves HBM
    traffic -- recommended on v5e, which is HBM-bound for this kernel).
    split_passes=3 -> ~f32-exact reduction (default); 2 -> ~16 mantissa bits, one fewer MXU pass.
    """
    # TODO(synk): PyTorch upcasts to float64; TPU Pallas has no f64 path, so the kernel computes
    # in float32 (expect ~1e-6..1e-5 relative deviation vs. the torch module).
    b, k = pi.shape
    b2, k2, d = mu.shape
    assert (b2, k2) == (b, k) and sigma.shape == mu.shape and y.shape == (b, d)
    assert split_passes in (2, 3)
    kd = k * d

    mu_f = mu.reshape(b, kd)       # contiguous -> free reshape, lane-dense blocks
    sg_f = sigma.reshape(b, kd)

    lane_pad = lambda n: -(-n // 128) * 128
    i_mu = jnp.dtype(mu.dtype).itemsize
    i_sg = jnp.dtype(sigma.dtype).itemsize
    i_pi = jnp.dtype(pi.dtype).itemsize
    i_y = jnp.dtype(y.dtype).itemsize
    # Sublane tile of the narrowest input dtype (f32: 8, bf16/f16: 16, int8/fp8: 32).
    sublane = max(8, 32 // min(i_mu, i_sg, i_pi, i_y))

    # ---- per-generation VMEM budget ----------------------------------------------------------
    try:
        vmem_cap = int(getattr(pltpu.get_tpu_info(), "vmem_capacity_bytes"))
    except Exception:
        vmem_cap = 64 << 20                       # conservative (v7x-sized) fallback
    # ~40 MiB scoped on v7x (64 MiB physical), up to 96 MiB on v5e/v6e (128 MiB physical).
    vmem_budget = min(max(vmem_cap - (24 << 20), 16 << 20), 96 << 20)
    two_core_chip = vmem_cap <= (64 << 20)        # v7x heuristic: 2 TensorCores per chip

    # Bytes per batch row resident in VMEM: double-buffered input blocks, the y-broadcast
    # scratch, and ~8 live (tb, kd_pad) f32-equivalent temporaries (yb/mu/sg/z/c/r + bf16 splits).
    kd_pad = lane_pad(kd)
    per_row = (2 * (kd_pad * (i_mu + i_sg) + lane_pad(k) * i_pi + lane_pad(d) * i_y)
               + kd_pad * i_y
               + 8 * kd_pad * 4)
    fixed = 2 << 20                               # selector vregs, out slab, misc headroom
    tb_cap = max(sublane, ((vmem_budget - fixed) // per_row) // sublane * sublane)

    tb = min(block_b, tb_cap)
    if two_core_chip and b > 256:
        # Guarantee >=2 grid tiles so "parallel" sharding feeds both v7x TensorCores.
        half = -(-pl.cdiv(b, 2) // sublane) * sublane
        tb = min(tb, half)
    tb = max((tb // sublane) * sublane, sublane)
    if b <= tb:
        tb = b                                    # single full-dim block (any b is legal)
    ntiles = pl.cdiv(b, tb)

    est = per_row * tb + fixed
    vmem_limit = (int(min(max(est + (4 << 20), 16 << 20), vmem_budget))
                  if est > (12 << 20) else None)

    cost = pl.CostEstimate(
        flops=int(12 * b * kd + split_passes * 2 * b * kd * k + 8 * b * k),
        transcendentals=int(2 * b * kd + b * k + b),   # reciprocal + log per elem, exp/log per (b,k)/b
        bytes_accessed=int(b * kd * (i_mu + i_sg) + b * k * i_pi + b * d * i_y
                           + ntiles * 8 * 128 * 4),
    )

    kernel = functools.partial(
        _nll_kernel, batch_size=b, n_comp=k, n_dim=d,
        split_passes=split_passes, mask_rows=(b % tb != 0))

    partials = pl.pallas_call(
        kernel,
        grid=(ntiles,),
        in_specs=[
            pl.BlockSpec((tb, k), lambda i: (i, 0)),     # pi
            pl.BlockSpec((tb, kd), lambda i: (i, 0)),    # mu (flattened)
            pl.BlockSpec((tb, kd), lambda i: (i, 0)),    # sigma (flattened)
            # Note: on v5e, if profiling shows exposed DMA at large tb, sweep
            # pipeline_mode=pl.Buffered(3) on the mu/sigma specs only (budget the extra buffer).
            pl.BlockSpec((tb, d), lambda i: (i, 0)),     # y
        ],
        out_specs=pl.BlockSpec((1, 8, 128), lambda i: (i, 0, 0)),   # lane-dense per-tile partial sums
        out_shape=jax.ShapeDtypeStruct((ntiles, 8, 128), jnp.float32),
        scratch_shapes=[pltpu.VMEM((tb, kd), y.dtype)],             # y broadcast buffer (y's dtype)
        compiler_params=pltpu.CompilerParams(
            dimension_semantics=("parallel",),
            vmem_limit_bytes=vmem_limit,
        ),
        cost_estimate=cost,
    )(pi, mu_f, sg_f, y)

    return -(jnp.sum(partials[:, 0, 0]) / b)


def _reference(pi, mu, sigma, y):
    pi = pi.astype(jnp.float32)
    mu = mu.astype(jnp.float32)
    sigma = sigma.astype(jnp.float32)
    y = y.astype(jnp.float32)
    z = (y[:, None, :] - mu) / sigma
    quad = jnp.einsum('bij,bij->bi', z, z, precision=jax.lax.Precision.HIGHEST)
    normal_loglik = -0.5 * quad - jnp.sum(jnp.log(sigma), axis=-1)
    loglik = jax.scipy.special.logsumexp(pi + normal_loglik, axis=-1)
    return jnp.mean(-loglik)


if __name__ == "__main__":
    def make_inputs(key, b, k, d, dtype=jnp.float32):
        k_pi, k_mu, k_sig, k_y = jax.random.split(key, 4)
        pi = jax.nn.log_softmax(jax.random.normal(k_pi, (b, k), dtype=jnp.float32), axis=-1)
        mu = jax.random.normal(k_mu, (b, k, d), dtype=jnp.float32)
        sigma = jax.nn.softplus(jax.random.normal(k_sig, (b, k, d), dtype=jnp.float32)) + 0.5
        y = jax.random.normal(k_y, (b, d), dtype=jnp.float32)
        return tuple(a.astype(dtype) for a in (pi, mu, sigma, y))

    key = jax.random.PRNGKey(0)

    # 1) small single-tile case (f32)
    key, sub = jax.random.split(key)
    args = make_inputs(sub, b=32, k=8, d=16)
    out = jax.block_until_ready(nll_loss(*args))
    ref = jax.block_until_ready(_reference(*args))
    assert jnp.allclose(out, ref, rtol=1e-5, atol=1e-5), (out, ref)

    # 2) multi-tile grid with a ragged (masked) last tile, small forced block
    key, sub = jax.random.split(key)
    args = make_inputs(sub, b=200, k=8, d=16)
    out = jax.block_until_ready(nll_loss(*args, block_b=64))
    ref = jax.block_until_ready(_reference(*args))
    assert jnp.allclose(out, ref, rtol=1e-5, atol=1e-5), (out, ref)

    # 3) bf16 inputs (half the HBM traffic); compare against the f32 reference on the same
    #    bf16-rounded values so only in-kernel error remains.
    key, sub = jax.random.split(key)
    args_bf = make_inputs(sub, b=64, k=8, d=16, dtype=jnp.bfloat16)
    out = jax.block_until_ready(nll_loss(*args_bf))
    ref = jax.block_until_ready(_reference(*[a.astype(jnp.float32) for a in args_bf]))
    assert jnp.allclose(out, ref, rtol=1e-4, atol=1e-4), (out, ref)

    # 4) bf16x2 reduction split (one fewer MXU pass), looser tolerance
    key, sub = jax.random.split(key)
    args2 = make_inputs(sub, b=96, k=8, d=16)
    out = jax.block_until_ready(nll_loss(*args2, split_passes=2))
    ref = jax.block_until_ready(_reference(*args2))
    assert jnp.allclose(out, ref, rtol=2e-4, atol=2e-4), (out, ref)

    print("KERNEL_OK")
</pallas_src>

<mosaic_0001>
module attributes {stable_mosaic.version = 11 : i64} {
  func.func @_nll_kernel(%arg0: i32, %arg1: memref<32x8xf32, #tpu.memory_space<vmem>>, %arg2: memref<32x128xf32, #tpu.memory_space<vmem>>, %arg3: memref<32x128xf32, #tpu.memory_space<vmem>>, %arg4: memref<32x16xf32, #tpu.memory_space<vmem>>, %arg5: memref<1x8x128xf32, #tpu.memory_space<vmem>>, %arg6: memref<32x128xf32, #tpu.memory_space<vmem>>) attributes {dimension_semantics = [#tpu.dimension_semantics<parallel>], iteration_bounds = array<i64: 1>, scalar_prefetch = 0 : i64, scratch_operands = 1 : i64, tpu.core_type = #tpu.core_type<tc>, window_params = [{transform_indices = @transform_0, window_bounds = array<i64: 32, 8>}, {transform_indices = @transform_1, window_bounds = array<i64: 32, 128>}, {transform_indices = @transform_2, window_bounds = array<i64: 32, 128>}, {transform_indices = @transform_3, window_bounds = array<i64: 32, 16>}, {transform_indices = @transform_4, window_bounds = array<i64: 1, 8, 128>}]} {
    %c0 = arith.constant 0 : index
    %c0_0 = arith.constant 0 : index
    %0 = vector.load %arg4[%c0, %c0_0] : memref<32x16xf32, #tpu.memory_space<vmem>>, vector<32x16xf32>
    %c0_1 = arith.constant 0 : index
    %c0_2 = arith.constant 0 : index
    %1 = vector.load %arg6[%c0_1, %c0_2] : memref<32x128xf32, #tpu.memory_space<vmem>>, vector<32x16xf32>
    tpu.vector_store %arg6[%c0_1, %c0_2], %0 {strides = array<i32>} : memref<32x128xf32, #tpu.memory_space<vmem>>, vector<32x16xf32>,
    %c0_3 = arith.constant 0 : index
    %c0_4 = arith.constant 0 : index
    %2 = vector.load %arg6[%c0_3, %c0_4] : memref<32x128xf32, #tpu.memory_space<vmem>>, vector<32x16xf32>
    %c0_5 = arith.constant 0 : index
    %c16 = arith.constant 16 : index
    %3 = vector.load %arg6[%c0_5, %c16] : memref<32x128xf32, #tpu.memory_space<vmem>>, vector<32x16xf32>
    tpu.vector_store %arg6[%c0_5, %c16], %2 {strides = array<i32>} : memref<32x128xf32, #tpu.memory_space<vmem>>, vector<32x16xf32>,
    %c0_6 = arith.constant 0 : index
    %c0_7 = arith.constant 0 : index
    %4 = vector.load %arg6[%c0_6, %c0_7] : memref<32x128xf32, #tpu.memory_space<vmem>>, vector<32x32xf32>
    %c0_8 = arith.constant 0 : index
    %c32 = arith.constant 32 : index
    %5 = vector.load %arg6[%c0_8, %c32] : memref<32x128xf32, #tpu.memory_space<vmem>>, vector<32x32xf32>
    tpu.vector_store %arg6[%c0_8, %c32], %4 {strides = array<i32>} : memref<32x128xf32, #tpu.memory_space<vmem>>, vector<32x32xf32>,
    %c0_9 = arith.constant 0 : index
    %c0_10 = arith.constant 0 : index
    %6 = vector.load %arg6[%c0_9, %c0_10] : memref<32x128xf32, #tpu.memory_space<vmem>>, vector<32x64xf32>
    %c0_11 = arith.constant 0 : index
    %c64 = arith.constant 64 : index
    %7 = vector.load %arg6[%c0_11, %c64] : memref<32x128xf32, #tpu.memory_space<vmem>>, vector<32x64xf32>
    tpu.vector_store %arg6[%c0_11, %c64], %6 {strides = array<i32>} : memref<32x128xf32, #tpu.memory_space<vmem>>, vector<32x64xf32>,
    %c0_12 = arith.constant 0 : index
    %c0_13 = arith.constant 0 : index
    %8 = vector.load %arg6[%c0_12, %c0_13] : memref<32x128xf32, #tpu.memory_space<vmem>>, vector<32x128xf32>
    %c0_14 = arith.constant 0 : index
    %c0_15 = arith.constant 0 : index
    %9 = vector.load %arg2[%c0_14, %c0_15] : memref<32x128xf32, #tpu.memory_space<vmem>>, vector<32x128xf32>
    %c0_16 = arith.constant 0 : index
    %c0_17 = arith.constant 0 : index
    %10 = vector.load %arg3[%c0_16, %c0_17] : memref<32x128xf32, #tpu.memory_space<vmem>>, vector<32x128xf32>
    %11 = arith.subf %8, %9 : vector<32x128xf32>
    %12 = arith.divf %11, %10 : vector<32x128xf32>
    %13 = arith.mulf %12, %12 : vector<32x128xf32>
    %cst = arith.constant -5.000000e-01 : f32
    %14 = vector.broadcast %cst : f32 to vector<32x128xf32>
    %15 = arith.mulf %14, %13 : vector<32x128xf32>
    %16 = math.log %10 : vector<32x128xf32>
    %17 = arith.subf %15, %16 : vector<32x128xf32>
    %18 = tpu.iota {dimensions = array<i32: 0>} : vector<128x8xi32>
    %19 = tpu.iota {dimensions = array<i32: 1>} : vector<128x8xi32>
    %c16_i32 = arith.constant 16 : i32
    %20 = vector.broadcast %c16_i32 : i32 to vector<128x8xi32>
    %21 = arith.muli %19, %20 : vector<128x8xi32>
    %22 = arith.cmpi sge, %18, %21 : vector<128x8xi32>
    %c16_i32_18 = arith.constant 16 : i32
    %23 = vector.broadcast %c16_i32_18 : i32 to vector<128x8xi32>
    %24 = arith.addi %21, %23 : vector<128x8xi32>
    %25 = arith.cmpi slt, %18, %24 : vector<128x8xi32>
    %26 = arith.andi %22, %25 : vector<128x8xi1>
    %cst_19 = arith.constant 1.000000e+00 : f32
    %cst_20 = arith.constant 0.000000e+00 : f32
    %27 = vector.broadcast %cst_19 : f32 to vector<128x8xf32>
    %28 = vector.broadcast %cst_20 : f32 to vector<128x8xf32>
    %29 = arith.select %26, %27, %28 : vector<128x8xi1>, vector<128x8xf32>
    %30 = arith.truncf %29 : vector<128x8xf32> to vector<128x8xbf16>
    %31 = arith.truncf %17 : vector<32x128xf32> to vector<32x128xbf16>
    %32 = arith.extf %31 : vector<32x128xbf16> to vector<32x128xf32>
    %33 = arith.subf %17, %32 : vector<32x128xf32>
    %34 = arith.truncf %33 : vector<32x128xf32> to vector<32x128xbf16>
    %cst_21 = arith.constant dense<0.000000e+00> : vector<32x8xf32>
    %35 = tpu.matmul %31, %30, %cst_21 {dimension_numbers = #tpu.dot_dimension_numbers<[1], [0], [0], [1], [0, 0, 1, 1], [], []>} : vector<32x128xbf16>, vector<128x8xbf16>, vector<32x8xf32> -> vector<32x8xf32>
    %cst_22 = arith.constant dense<0.000000e+00> : vector<32x8xf32>
    %36 = tpu.matmul %34, %30, %cst_22 {dimension_numbers = #tpu.dot_dimension_numbers<[1], [0], [0], [1], [0, 0, 1, 1], [], []>} : vector<32x128xbf16>, vector<128x8xbf16>, vector<32x8xf32> -> vector<32x8xf32>
    %37 = arith.addf %35, %36 : vector<32x8xf32>
    %38 = arith.extf %34 : vector<32x128xbf16> to vector<32x128xf32>
    %39 = arith.subf %33, %38 : vector<32x128xf32>
    %40 = arith.truncf %39 : vector<32x128xf32> to vector<32x128xbf16>
    %cst_23 = arith.constant dense<0.000000e+00> : vector<32x8xf32>
    %41 = tpu.matmul %40, %30, %cst_23 {dimension_numbers = #tpu.dot_dimension_numbers<[1], [0], [0], [1], [0, 0, 1, 1], [], []>} : vector<32x128xbf16>, vector<128x8xbf16>, vector<32x8xf32> -> vector<32x8xf32>
    %42 = arith.addf %37, %41 : vector<32x8xf32>
    %c0_24 = arith.constant 0 : index
    %c0_25 = arith.constant 0 : index
    %43 = vector.load %arg1[%c0_24, %c0_25] : memref<32x8xf32, #tpu.memory_space<vmem>>, vector<32x8xf32>
    %44 = arith.addf %43, %42 : vector<32x8xf32>
    %cst_26 = arith.constant dense<0xFF800000> : vector<32xf32>
    %45 = vector.multi_reduction <maximumf>, %44, %cst_26 [1] : vector<32x8xf32> to vector<32xf32>
    %46 = vector.shape_cast %45 : vector<32xf32> to vector<32x1xf32>
    %47 = vector.broadcast %46 : vector<32x1xf32> to vector<32x8xf32>
    %48 = arith.subf %44, %47 : vector<32x8xf32>
    %49 = math.exp %48 : vector<32x8xf32>
    %cst_27 = arith.constant dense<0.000000e+00> : vector<32xf32>
    %50 = vector.multi_reduction <add>, %49, %cst_27 [1] : vector<32x8xf32> to vector<32xf32>
    %51 = vector.shape_cast %50 : vector<32xf32> to vector<32x1xf32>
    %52 = math.log %51 : vector<32x1xf32>
    %53 = arith.addf %46, %52 : vector<32x1xf32>
    %54 = vector.shape_cast %53 : vector<32x1xf32> to vector<1x32x1xf32>
    %cst_28 = arith.constant dense<0.000000e+00> : vector<1xf32>
    %55 = vector.multi_reduction <add>, %54, %cst_28 [1, 2] : vector<1x32x1xf32> to vector<1xf32>
    %56 = vector.shape_cast %55 : vector<1xf32> to vector<1x1x1xf32>
    %57 = vector.extract %56[0, 0, 0] : f32 from vector<1x1x1xf32>
    %58 = vector.broadcast %57 : f32 to vector<1x8x128xf32>
    %c0_29 = arith.constant 0 : index
    %c0_30 = arith.constant 0 : index
    %c0_31 = arith.constant 0 : index
    %59 = vector.load %arg5[%c0_29, %c0_30, %c0_31] : memref<1x8x128xf32, #tpu.memory_space<vmem>>, vector<1x8x128xf32>
    tpu.vector_store %arg5[%c0_29, %c0_30, %c0_31], %58 {strides = array<i32>} : memref<1x8x128xf32, #tpu.memory_space<vmem>>, vector<1x8x128xf32>,
    return
  }
  func.func @transform_0(%arg0: i32) -> (i32, i32) {
    %c0_i32 = arith.constant 0 : i32
    %c0_i32_0 = arith.constant 0 : i32
    return %arg0, %c0_i32 : i32, i32
  }
  func.func @transform_1(%arg0: i32) -> (i32, i32) {
    %c0_i32 = arith.constant 0 : i32
    %c0_i32_0 = arith.constant 0 : i32
    return %arg0, %c0_i32 : i32, i32
  }
  func.func @transform_2(%arg0: i32) -> (i32, i32) {
    %c0_i32 = arith.constant 0 : i32
    %c0_i32_0 = arith.constant 0 : i32
    return %arg0, %c0_i32 : i32, i32
  }
  func.func @transform_3(%arg0: i32) -> (i32, i32) {
    %c0_i32 = arith.constant 0 : i32
    %c0_i32_0 = arith.constant 0 : i32
    return %arg0, %c0_i32 : i32, i32
  }
  func.func @transform_4(%arg0: i32) -> (i32, i32, i32) {
    %c0_i32 = arith.constant 0 : i32
    %c0_i32_0 = arith.constant 0 : i32
    %c0_i32_1 = arith.constant 0 : i32
    return %arg0, %c0_i32, %c0_i32_0 : i32, i32, i32
  }
}

</mosaic_0001>

<llo_original>
// kernel: tpu_custom_call.1
$region0: #{tpu_custom_call.1}
  #allocation0 [shape = 'u32[]', space=smem, size = 0x4, offset = 0x4, fixed_abs, tag = 'smem constant byte address 0x4 - core index']
  #allocation1 [shape = 'u32[144,128]{1,0:T(1,128)}', space=vmem, size = 0x12000, scoped, tag = 'internal scratch']
  #allocation2 [shape = 'f32[32,128]{1,0:T(8,128)}', space=vmem, size = 0x4000, scoped, tag = 'scratch operand']
  %s0 = inlined_call_operand.vmem [shape: f32[32,8], index: 0, kind: input, shape index: {}]
  %s1 = inlined_call_operand.vmem [shape: f32[32,128], index: 1, kind: input, shape index: {}]
  %s2 = inlined_call_operand.vmem [shape: f32[32,128], index: 2, kind: input, shape index: {}]
  %s3 = inlined_call_operand.vmem [shape: f32[32,16], index: 3, kind: input, shape index: {}]
  %s4 = inlined_call_operand.hbm [shape: f32[1,8,128], index: 4, kind: output, shape index: {}]
  %s5 = sld [smem:[#allocation0]]
  $region26: #{tpu_custom_call.1} parent=0
    _
  %s7 = ssub.s32 1, %s5
  %s8 = scalar_select 0, %s7, %s5
  $region1: #{tpu_custom_call.1} parent=0
    #allocation3 [shape = 'u8[4096]{0}', space=vmem, size = 0x1000, scoped, tag = 'output window, operand 0, single buffered']
    #allocation4 [shape = 's32[1]{0}', space=sflag, size = 0x4, scoped, tag = 'scoped memory for tpu_custom_call.1']
    %9 = vsyncpa [#allocation4], 0
    // Predicated region
    $region2: #{tpu_custom_call.1} parent=1 // pred_check
      _
    $region3: #{tpu_custom_call.1} parent=1 // pred_check_branch
      %11 = sbr.rel (0) target = $region5
    $region4: #{tpu_custom_call.1} parent=1 // pred_region
      _
    $region5: #{tpu_custom_call.1} parent=1 // pred_fallthru
      _
    // Predicated region
    $region6: #{tpu_custom_call.1} parent=1 // pred_check
      _
    $region7: #{tpu_custom_call.1} parent=1 // pred_check_branch
      %13 = sbr.rel (0) target = $region9
    $region8: #{tpu_custom_call.1} parent=1 // pred_region
      _
    $region9: #{tpu_custom_call.1} parent=1 // pred_fallthru
      _
    // Predicated region
    $region10: #{tpu_custom_call.1} parent=1 // pred_check
      _
    $region11: #{tpu_custom_call.1} parent=1 // pred_check_branch
      %15 = sbr.rel (0) target = $region13
    $region12: #{tpu_custom_call.1} parent=1 // pred_region
      _
    $region13: #{tpu_custom_call.1} parent=1 // pred_fallthru
      _
    // Predicated region
    $region14: #{tpu_custom_call.1} parent=1 // pred_check
      _
    $region15: #{tpu_custom_call.1} parent=1 // pred_check_branch
      %17 = sbr.rel (0) target = $region17
    $region16: #{tpu_custom_call.1} parent=1 // pred_region
      _
    $region17: #{tpu_custom_call.1} parent=1 // pred_fallthru
      _
    %v19 = vld [vmem:[%s3] sm:$0xff]
    %v20 = vld [vmem:[%s3 + $0x8] sm:$0xff]
    %v21 = vld [vmem:[%s3 + $0x10] sm:$0xff]
    %v22 = vld [vmem:[%s3 + $0x18] sm:$0xff]
    %vm23 = vcmask 130048
    %24 = vst.msk [vmem:[#allocation2] sm:$0xff] %vm23, %v19
    %25 = vst.msk [vmem:[#allocation2 + $0x8] sm:$0xff] %vm23, %v20
    %26 = vst.msk [vmem:[#allocation2 + $0x10] sm:$0xff] %vm23, %v21
    %27 = vst.msk [vmem:[#allocation2 + $0x18] sm:$0xff] %vm23, %v22
    %v28 = vld [vmem:[#allocation2] sm:$0xff]
    %v29 = vld [vmem:[#allocation2 + $0x8] sm:$0xff]
    %v30 = vld [vmem:[#allocation2 + $0x10] sm:$0xff]
    %v31 = vld [vmem:[#allocation2 + $0x18] sm:$0xff]
    %36 = vrot.lane.b32.xlu0 %v28, 16
    %v37 = vpop.permute.xlu0 %36
    %38 = vrot.lane.b32.xlu0 %v29, 16
    %v39 = vpop.permute.xlu0 %38
    %40 = vrot.lane.b32.xlu0 %v30, 16
    %v41 = vpop.permute.xlu0 %40
    %42 = vrot.lane.b32.xlu0 %v31, 16
    %v43 = vpop.permute.xlu0 %42
    %vm48 = vcmask 261248
    %49 = vst.msk [vmem:[#allocation2] sm:$0xff] %vm48, %v37
    %50 = vst.msk [vmem:[#allocation2 + $0x8] sm:$0xff] %vm48, %v39
    %51 = vst.msk [vmem:[#allocation2 + $0x10] sm:$0xff] %vm48, %v41
    %52 = vst.msk [vmem:[#allocation2 + $0x18] sm:$0xff] %vm48, %v43
    %v53 = vld [vmem:[#allocation2] sm:$0xff]
    %v54 = vld [vmem:[#allocation2 + $0x8] sm:$0xff]
    %v55 = vld [vmem:[#allocation2 + $0x10] sm:$0xff]
    %v56 = vld [vmem:[#allocation2 + $0x18] sm:$0xff]
    %61 = vrot.lane.b32.xlu0 %v53, 32
    %v62 = vpop.permute.xlu0 %61
    %63 = vrot.lane.b32.xlu0 %v54, 32
    %v64 = vpop.permute.xlu0 %63
    %65 = vrot.lane.b32.xlu0 %v55, 32
    %v66 = vpop.permute.xlu0 %65
    %67 = vrot.lane.b32.xlu0 %v56, 32
    %v68 = vpop.permute.xlu0 %67
    %vm73 = vcmask 523520
    %74 = vst.msk [vmem:[#allocation2] sm:$0xff] %vm73, %v62
    %75 = vst.msk [vmem:[#allocation2 + $0x8] sm:$0xff] %vm73, %v64
    %76 = vst.msk [vmem:[#allocation2 + $0x10] sm:$0xff] %vm73, %v66
    %77 = vst.msk [vmem:[#allocation2 + $0x18] sm:$0xff] %vm73, %v68
    %v78 = vld [vmem:[#allocation2] sm:$0xff]
    %v79 = vld [vmem:[#allocation2 + $0x8] sm:$0xff]
    %v80 = vld [vmem:[#allocation2 + $0x10] sm:$0xff]
    %v81 = vld [vmem:[#allocation2 + $0x18] sm:$0xff]
    %86 = vrot.lane.b32.xlu0 %v78, 64
    %v87 = vpop.permute.xlu0 %86
    %88 = vrot.lane.b32.xlu0 %v79, 64
    %v89 = vpop.permute.xlu0 %88
    %90 = vrot.lane.b32.xlu0 %v80, 64
    %v91 = vpop.permute.xlu0 %90
    %92 = vrot.lane.b32.xlu0 %v81, 64
    %v93 = vpop.permute.xlu0 %92
    %vm98 = vcmask 1048064
    %99 = vst.msk [vmem:[#allocation2] sm:$0xff] %vm98, %v87
    %100 = vst.msk [vmem:[#allocation2 + $0x8] sm:$0xff] %vm98, %v89
    %101 = vst.msk [vmem:[#allocation2 + $0x10] sm:$0xff] %vm98, %v91
    %102 = vst.msk [vmem:[#allocation2 + $0x18] sm:$0xff] %vm98, %v93
    %v103 = vld [vmem:[#allocation2] sm:$0xff]
    %v104 = vld [vmem:[#allocation2 + $0x8] sm:$0xff]
    %v105 = vld [vmem:[#allocation2 + $0x10] sm:$0xff]
    %v106 = vld [vmem:[#allocation2 + $0x18] sm:$0xff]
    %v107 = vld [vmem:[%s1] sm:$0xff]
    %v108 = vld [vmem:[%s1 + $0x8] sm:$0xff]
    %v109 = vld [vmem:[%s1 + $0x10] sm:$0xff]
    %v110 = vld [vmem:[%s1 + $0x18] sm:$0xff]
    %v111 = vld [vmem:[%s2] sm:$0xff]
    %v112 = vld [vmem:[%s2 + $0x8] sm:$0xff]
    %v113 = vld [vmem:[%s2 + $0x10] sm:$0xff]
    %v114 = vld [vmem:[%s2 + $0x18] sm:$0xff]
    %v115 = vsub.f32 %v103, %v107
    %v116 = vsub.f32 %v104, %v108
    %v117 = vsub.f32 %v105, %v109
    %v118 = vsub.f32 %v106, %v110
    %v119 = vrcp.pop %v111
    %v120 = vmul.f32 %v115, %v119
    %v121 = vrcp.pop %v112
    %v122 = vmul.f32 %v116, %v121
    %v123 = vrcp.pop %v113
    %v124 = vmul.f32 %v117, %v123
    %v125 = vrcp.pop %v114
    %v126 = vmul.f32 %v118, %v125
    %v127 = vmul.f32 %v120, %v120
    %v128 = vmul.f32 %v122, %v122
    %v129 = vmul.f32 %v124, %v124
    %v130 = vmul.f32 %v126, %v126
    %v131 = vmul.f32 %v127, -0.5
    %v132 = vmul.f32 %v128, -0.5
    %v133 = vmul.f32 %v129, -0.5
    %v134 = vmul.f32 %v130, -0.5
    %v135 = vlog2.pop %v111
    %v136 = vmul.f32 %v135, 0.6931472
    %v137 = vlog2.pop %v112
    %v138 = vmul.f32 %v137, 0.6931472
    %v139 = vlog2.pop %v113
    %v140 = vmul.f32 %v139, 0.6931472
    %v141 = vlog2.pop %v114
    %v142 = vmul.f32 %v141, 0.6931472
    %v143 = vsub.f32 %v131, %v136
    %v144 = vsub.f32 %v132, %v138
    %v145 = vsub.f32 %v133, %v140
    %v146 = vsub.f32 %v134, %v142
    %v147 = vlaneseq
    %v148 = vshrl.u32 %v147, 7
    %v149 = vadd.s32 %v148, 8
    %v150 = vadd.s32 %v148, 16
    %v151 = vadd.s32 %v148, 24
    %v152 = vadd.s32 %v148, 32
    %v153 = vadd.s32 %v148, 40
    %v154 = vadd.s32 %v148, 48
    %v155 = vadd.s32 %v148, 56
    %v156 = vadd.s32 %v148, 64
    %v157 = vadd.s32 %v148, 72
    %v158 = vadd.s32 %v148, 80
    %v159 = vadd.s32 %v148, 88
    %v160 = vadd.s32 %v148, 96
    %v161 = vadd.s32 %v148, 104
    %v162 = vadd.s32 %v148, 112
    %v163 = vadd.s32 %v148, 120
    %v164 = vlaneseq
    %v165 = vand.u32 %v164, 127
    %v166 = vmul.u32 %v165, 16
    %vm167 = vcmp.ge.s32.totalorder %v148, %v166
    %vm168 = vcmp.ge.s32.totalorder %v149, %v166
    %vm169 = vcmp.ge.s32.totalorder %v150, %v166
    %vm170 = vcmp.ge.s32.totalorder %v151, %v166
    %vm171 = vcmp.ge.s32.totalorder %v152, %v166
    %vm172 = vcmp.ge.s32.totalorder %v153, %v166
    %vm173 = vcmp.ge.s32.totalorder %v154, %v166
    %vm174 = vcmp.ge.s32.totalorder %v155, %v166
    %vm175 = vcmp.ge.s32.totalorder %v156, %v166
    %vm176 = vcmp.ge.s32.totalorder %v157, %v166
    %vm177 = vcmp.ge.s32.totalorder %v158, %v166
    %vm178 = vcmp.ge.s32.totalorder %v159, %v166
    %vm179 = vcmp.ge.s32.totalorder %v160, %v166
    %vm180 = vcmp.ge.s32.totalorder %v161, %v166
    %vm181 = vcmp.ge.s32.totalorder %v162, %v166
    %vm182 = vcmp.ge.s32.totalorder %v163, %v166
    %v183 = vadd.s32 %v166, 16
    %vm184 = vcmp.lt.s32.totalorder %v148, %v183
    %vm185 = vcmp.lt.s32.totalorder %v149, %v183
    %vm186 = vcmp.lt.s32.totalorder %v150, %v183
    %vm187 = vcmp.lt.s32.totalorder %v151, %v183
    %vm188 = vcmp.lt.s32.totalorder %v152, %v183
    %vm189 = vcmp.lt.s32.totalorder %v153, %v183
    %vm190 = vcmp.lt.s32.totalorder %v154, %v183
    %vm191 = vcmp.lt.s32.totalorder %v155, %v183
    %vm192 = vcmp.lt.s32.totalorder %v156, %v183
    %vm193 = vcmp.lt.s32.totalorder %v157, %v183
    %vm194 = vcmp.lt.s32.totalorder %v158, %v183
    %vm195 = vcmp.lt.s32.totalorder %v159, %v183
    %vm196 = vcmp.lt.s32.totalorder %v160, %v183
    %vm197 = vcmp.lt.s32.totalorder %v161, %v183
    %vm198 = vcmp.lt.s32.totalorder %v162, %v183
    %vm199 = vcmp.lt.s32.totalorder %v163, %v183
    %vm200 = vmand %vm167, %vm184
    %vm201 = vmand %vm168, %vm185
    %vm202 = vmand %vm169, %vm186
    %vm203 = vmand %vm170, %vm187
    %vm204 = vmand %vm171, %vm188
    %vm205 = vmand %vm172, %vm189
    %vm206 = vmand %vm173, %vm190
    %vm207 = vmand %vm174, %vm191
    %vm208 = vmand %vm175, %vm192
    %vm209 = vmand %vm176, %vm193
    %vm210 = vmand %vm177, %vm194
    %vm211 = vmand %vm178, %vm195
    %vm212 = vmand %vm179, %vm196
    %vm213 = vmand %vm180, %vm197
    %vm214 = vmand %vm181, %vm198
    %vm215 = vmand %vm182, %vm199
    %v216 = vsel %vm200, 1.0, 0.0
    %v217 = vsel %vm201, 1.0, 0.0
    %v218 = vsel %vm202, 1.0, 0.0
    %v219 = vsel %vm203, 1.0, 0.0
    %v220 = vsel %vm204, 1.0, 0.0
    %v221 = vsel %vm205, 1.0, 0.0
    %v222 = vsel %vm206, 1.0, 0.0
    %v223 = vsel %vm207, 1.0, 0.0
    %v224 = vsel %vm208, 1.0, 0.0
    %v225 = vsel %vm209, 1.0, 0.0
    %v226 = vsel %vm210, 1.0, 0.0
    %v227 = vsel %vm211, 1.0, 0.0
    %v228 = vsel %vm212, 1.0, 0.0
    %v229 = vsel %vm213, 1.0, 0.0
    %v230 = vsel %vm214, 1.0, 0.0
    %v231 = vsel %vm215, 1.0, 0.0
    %v232 = vpack.c.bf16 %v217, %v216
    %v233 = vpack.c.bf16 %v219, %v218
    %v234 = vpack.c.bf16 %v221, %v220
    %v235 = vpack.c.bf16 %v223, %v222
    %v236 = vpack.c.bf16 %v225, %v224
    %v237 = vpack.c.bf16 %v227, %v226
    %v238 = vpack.c.bf16 %v229, %v228
    %v239 = vpack.c.bf16 %v231, %v230
    %v240 = vpack.c.bf16 %v144, %v143
    %v241 = vpack.c.bf16 %v146, %v145
    %v242 = vunpack.c.l.bf16 %v240
    %v243 = vunpack.c.h.bf16 %v240
    %v244 = vunpack.c.l.bf16 %v241
    %v245 = vunpack.c.h.bf16 %v241
    %v246 = vsub.f32 %v143, %v242
    %v247 = vsub.f32 %v144, %v243
    %v248 = vsub.f32 %v145, %v244
    %v249 = vsub.f32 %v146, %v245
    %v250 = vpack.c.bf16 %v247, %v246
    %v251 = vpack.c.bf16 %v249, %v248
    %252 = vmatprep.subr.bf16.mxu0 0
    %253 = vmatpush1.bf16.msra.mxu0 %v232
    %254 = vmatprep.subr.bf16.mxu0 0
    %255 = vmatpush1.bf16.msra.mxu0 %v233
    %256 = vmatprep.subr.bf16.mxu0 0
    %257 = vmatpush1.bf16.msra.mxu0 %v234
    %258 = vmatprep.subr.bf16.mxu0 0
    %259 = vmatpush1.bf16.msra.mxu0 %v235
    %260 = vmatprep.subr.bf16.mxu0 0
    %261 = vmatpush1.bf16.msra.mxu0 %v236
    %262 = vmatprep.subr.bf16.mxu0 0
    %263 = vmatpush1.bf16.msra.mxu0 %v237
    %264 = vmatprep.subr.bf16.mxu0 0
    %265 = vmatpush1.bf16.msra.mxu0 %v238
    %266 = vmatprep.subr.bf16.mxu0 0
    %267 = vmatpush1.bf16.msra.mxu0 %v239
    %268 = vmatprep.subr.bf16.mxu0 0
    %269 = vmatpush1.bf16.msra.mxu0 0
    %270 = vmatprep.subr.bf16.mxu0 0
    %271 = vmatpush1.bf16.msra.mxu0 0
    %272 = vmatprep.subr.bf16.mxu0 0
    %273 = vmatpush1.bf16.msra.mxu0 0
    %274 = vmatprep.subr.bf16.mxu0 0
    %275 = vmatpush1.bf16.msra.mxu0 0
    %276 = vmatprep.subr.bf16.mxu0 0
    %277 = vmatpush1.bf16.msra.mxu0 0
    %278 = vmatprep.subr.bf16.mxu0 0
    %279 = vmatpush1.bf16.msra.mxu0 0
    %280 = vmatprep.subr.bf16.mxu0 0
    %281 = vmatpush1.bf16.msra.mxu0 0
    %282 = vmatprep.subr.bf16.mxu0 0
    %283 = vmatpush1.bf16.msra.mxu0 0
    %284 = vmatprep.mubr.bf16.mxu0 0
    %285 = vmatmul.mubr.bf16.gmra.mrb[0].mxu0 %v250
    %v286 = vpop.f32.mrb[0].mxu0
    %v287 = vadd.f32 0.0, %v286
    %v288 = vpop.f32.mrb[0].mxu0
    %v289 = vpop.f32.mrb[0].mxu0
    %v290 = vadd.f32 0.0, %v289
    %v291 = vpop.f32.mrb[0].mxu0
    %292 = vmatprep.mubr.bf16.mxu0 0
    %293 = vmatmul.mubr.bf16.gmra.mrb[0].mxu0 %v251
    %v294 = vpop.f32.mrb[0].mxu0
    %v295 = vadd.f32 0.0, %v294
    %v296 = vpop.f32.mrb[0].mxu0
    %v297 = vpop.f32.mrb[0].mxu0
    %v298 = vadd.f32 0.0, %v297
    %v299 = vpop.f32.mrb[0].mxu0
    %300 = vdwg.mxu0
    %301 = vmatprep.subr.bf16.mxu0 0
    %302 = vmatpush1.bf16.msra.mxu0 %v232
    %303 = vmatprep.subr.bf16.mxu0 0
    %304 = vmatpush1.bf16.msra.mxu0 %v233
    %305 = vmatprep.subr.bf16.mxu0 0
    %306 = vmatpush1.bf16.msra.mxu0 %v234
    %307 = vmatprep.subr.bf16.mxu0 0
    %308 = vmatpush1.bf16.msra.mxu0 %v235
    %309 = vmatprep.subr.bf16.mxu0 0
    %310 = vmatpush1.bf16.msra.mxu0 %v236
    %311 = vmatprep.subr.bf16.mxu0 0
    %312 = vmatpush1.bf16.msra.mxu0 %v237
    %313 = vmatprep.subr.bf16.mxu0 0
    %314 = vmatpush1.bf16.msra.mxu0 %v238
    %315 = vmatprep.subr.bf16.mxu0 0
    %316 = vmatpush1.bf16.msra.mxu0 %v239
    %317 = vmatprep.subr.bf16.mxu0 0
    %318 = vmatpush1.bf16.msra.mxu0 0
    %319 = vmatprep.subr.bf16.mxu0 0
    %320 = vmatpush1.bf16.msra.mxu0 0
    %321 = vmatprep.subr.bf16.mxu0 0
    %322 = vmatpush1.bf16.msra.mxu0 0
    %323 = vmatprep.subr.bf16.mxu0 0
    %324 = vmatpush1.bf16.msra.mxu0 0
    %325 = vmatprep.subr.bf16.mxu0 0
    %326 = vmatpush1.bf16.msra.mxu0 0
    %327 = vmatprep.subr.bf16.mxu0 0
    %328 = vmatpush1.bf16.msra.mxu0 0
    %329 = vmatprep.subr.bf16.mxu0 0
    %330 = vmatpush1.bf16.msra.mxu0 0
    %331 = vmatprep.subr.bf16.mxu0 0
    %332 = vmatpush1.bf16.msra.mxu0 0
    %333 = vmatprep.mubr.bf16.mxu0 0
    %334 = vmatmul.mubr.bf16.gmra.mrb[0].mxu0 %v240
    %v335 = vpop.f32.mrb[0].mxu0
    %v336 = vadd.f32 %v287, %v335
    %v337 = vpop.f32.mrb[0].mxu0
    %v338 = vpop.f32.mrb[0].mxu0
    %v339 = vadd.f32 %v290, %v338
    %v340 = vpop.f32.mrb[0].mxu0
    %341 = vmatprep.mubr.bf16.mxu0 0
    %342 = vmatmul.mubr.bf16.gmra.mrb[0].mxu0 %v241
    %v343 = vpop.f32.mrb[0].mxu0
    %v344 = vadd.f32 %v295, %v343
    %v345 = vpop.f32.mrb[0].mxu0
    %v346 = vpop.f32.mrb[0].mxu0
    %v347 = vadd.f32 %v298, %v346
    %v348 = vpop.f32.mrb[0].mxu0
    %349 = vdwg.mxu0
    %v350 = vunpack.c.l.bf16 %v250
    %v351 = vunpack.c.h.bf16 %v250
    %v352 = vunpack.c.l.bf16 %v251
    %v353 = vunpack.c.h.bf16 %v251
    %v354 = vsub.f32 %v246, %v350
    %v355 = vsub.f32 %v247, %v351
    %v356 = vsub.f32 %v248, %v352
    %v357 = vsub.f32 %v249, %v353
    %v358 = vpack.c.bf16 %v355, %v354
    %v359 = vpack.c.bf16 %v357, %v356
    %360 = vmatprep.subr.bf16.mxu0 0
    %361 = vmatpush1.bf16.msra.mxu0 %v232
    %362 = vmatprep.subr.bf16.mxu0 0
    %363 = vmatpush1.bf16.msra.mxu0 %v233
    %364 = vmatprep.subr.bf16.mxu0 0
    %365 = vmatpush1.bf16.msra.mxu0 %v234
    %366 = vmatprep.subr.bf16.mxu0 0
    %367 = vmatpush1.bf16.msra.mxu0 %v235
    %368 = vmatprep.subr.bf16.mxu0 0
    %369 = vmatpush1.bf16.msra.mxu0 %v236
    %370 = vmatprep.subr.bf16.mxu0 0
    %371 = vmatpush1.bf16.msra.mxu0 %v237
    %372 = vmatprep.subr.bf16.mxu0 0
    %373 = vmatpush1.bf16.msra.mxu0 %v238
    %374 = vmatprep.subr.bf16.mxu0 0
    %375 = vmatpush1.bf16.msra.mxu0 %v239
    %376 = vmatprep.subr.bf16.mxu0 0
    %377 = vmatpush1.bf16.msra.mxu0 0
    %378 = vmatprep.subr.bf16.mxu0 0
    %379 = vmatpush1.bf16.msra.mxu0 0
    %380 = vmatprep.subr.bf16.mxu0 0
    %381 = vmatpush1.bf16.msra.mxu0 0
    %382 = vmatprep.subr.bf16.mxu0 0
    %383 = vmatpush1.bf16.msra.mxu0 0
    %384 = vmatprep.subr.bf16.mxu0 0
    %385 = vmatpush1.bf16.msra.mxu0 0
    %386 = vmatprep.subr.bf16.mxu0 0
    %387 = vmatpush1.bf16.msra.mxu0 0
    %388 = vmatprep.subr.bf16.mxu0 0
    %389 = vmatpush1.bf16.msra.mxu0 0
    %390 = vmatprep.subr.bf16.mxu0 0
    %391 = vmatpush1.bf16.msra.mxu0 0
    %392 = vmatprep.mubr.bf16.mxu0 0
    %393 = vmatmul.mubr.bf16.gmra.mrb[0].mxu0 %v358
    %v394 = vpop.f32.mrb[0].mxu0
    %v395 = vadd.f32 0.0, %v394
    %v396 = vpop.f32.mrb[0].mxu0
    %v397 = vpop.f32.mrb[0].mxu0
    %v398 = vadd.f32 0.0, %v397
    %v399 = vpop.f32.mrb[0].mxu0
    %400 = vmatprep.mubr.bf16.mxu0 0
    %401 = vmatmul.mubr.bf16.gmra.mrb[0].mxu0 %v359
    %v402 = vpop.f32.mrb[0].mxu0
    %v403 = vadd.f32 0.0, %v402
    %v404 = vpop.f32.mrb[0].mxu0
    %v405 = vpop.f32.mrb[0].mxu0
    %v406 = vadd.f32 0.0, %v405
    %v407 = vpop.f32.mrb[0].mxu0
    %408 = vdwg.mxu0
    %v409 = vadd.f32 %v336, %v395
    %v410 = vadd.f32 %v339, %v398
    %v411 = vadd.f32 %v344, %v403
    %v412 = vadd.f32 %v347, %v406
    %v413 = vld [vmem:[%s0] sm:$0xff]
    %v414 = vld [vmem:[%s0 + $0x8] sm:$0xff]
    %v415 = vld [vmem:[%s0 + $0x10] sm:$0xff]
    %v416 = vld [vmem:[%s0 + $0x18] sm:$0xff]
    %v417 = vadd.f32 %v413, %v409
    %v418 = vadd.f32 %v414, %v410
    %v419 = vadd.f32 %v415, %v411
    %v420 = vadd.f32 %v416, %v412
    %vm421 = vcmask 64512
    %v422 = vsel %vm421, %v417, -inf
    %423 = vmax.xlane.f32.xlu0 %v422
    %v424 = vpop.xlane.xlu0 %423
    %v425 = vsel %vm421, %v418, -inf
    %426 = vmax.xlane.f32.xlu0 %v425
    %v427 = vpop.xlane.xlu0 %426
    %v428 = vsel %vm421, %v419, -inf
    %429 = vmax.xlane.f32.xlu0 %v428
    %v430 = vpop.xlane.xlu0 %429
    %v431 = vsel %vm421, %v420, -inf
    %432 = vmax.xlane.f32.xlu0 %v431
    %v433 = vpop.xlane.xlu0 %432
    %v434 = vsub.f32 %v417, %v424
    %v435 = vsub.f32 %v418, %v427
    %v436 = vsub.f32 %v419, %v430
    %v437 = vsub.f32 %v420, %v433
    %v438 = vmul.f32 %v434, 1.442695
    %v439 = vpow.pop %v438
    %v440 = vmul.f32 %v435, 1.442695
    %v441 = vpow.pop %v440
    %v442 = vmul.f32 %v436, 1.442695
    %v443 = vpow.pop %v442
    %v444 = vmul.f32 %v437, 1.442695
    %v445 = vpow.pop %v444
    %v446 = vsel %vm421, %v439, 0.0
    %447 = vadd.xlane.f32.xlu0 %v446
    %v448 = vpop.xlane.xlu0 %447
    %v449 = vsel %vm421, %v441, 0.0
    %450 = vadd.xlane.f32.xlu0 %v449
    %v451 = vpop.xlane.xlu0 %450
    %v452 = vsel %vm421, %v443, 0.0
    %453 = vadd.xlane.f32.xlu0 %v452
    %v454 = vpop.xlane.xlu0 %453
    %v455 = vsel %vm421, %v445, 0.0
    %456 = vadd.xlane.f32.xlu0 %v455
    %v457 = vpop.xlane.xlu0 %456
    %v458 = vlog2.pop %v448
    %v459 = vmul.f32 %v458, 0.6931472
    %v460 = vlog2.pop %v451
    %v461 = vmul.f32 %v460, 0.6931472
    %v462 = vlog2.pop %v454
    %v463 = vmul.f32 %v462, 0.6931472
    %v464 = vlog2.pop %v457
    %v465 = vmul.f32 %v464, 0.6931472
    %v466 = vadd.f32 %v424, %v459
    %v467 = vadd.f32 %v427, %v461
    %v468 = vadd.f32 %v430, %v463
    %v469 = vadd.f32 %v433, %v465
    %vm470 = vcmask 7168
    %v471 = vsel %vm470, %v466, 0.0
    %v472 = vsel %vm470, %v467, 0.0
    %v473 = vadd.f32 %v471, %v472
    %v474 = vsel %vm470, %v468, 0.0
    %v475 = vadd.f32 %v473, %v474
    %v476 = vsel %vm470, %v469, 0.0
    %v477 = vadd.f32 %v475, %v476
    %478 = vadd.xlane.f32.xlu0 %v477
    %v479 = vpop.xlane.xlu0 %478
    %v480 = vrot.slane %v479, 4
    %v481 = vadd.f32 %v479, %v480
    %v482 = vrot.slane %v481, 2
    %v483 = vadd.f32 %v481, %v482
    %v484 = vrot.slane %v483, 1
    %v485 = vadd.f32 %v483, %v484
    %s486 = vtos %v485
    %v487 = vstv %s486
    %488 = vst [vmem:[#allocation3] sm:$0xff] %v487
    // Predicated region
    $region18: #{tpu_custom_call.1} parent=1 // pred_check
      _
    $region19: #{tpu_custom_call.1} parent=1 // pred_check_branch
      %490 = sbr.rel (0) target = $region21
    $region20: #{tpu_custom_call.1} parent=1 // pred_region
      %s492 = ssub.s32 128, 128
      %493 = vsyncadd [#allocation4], %s492
      %s495 = sshll.u32 [#allocation3], 4
      %s496 = int_to_ptr.vmem [resolvable:$true] %s495
      %498 = dma.vmem_to_hbm [thread:$0]  %s496, 128, %s4, [#allocation4]
    $region21: #{tpu_custom_call.1} parent=1 // pred_fallthru
      _
    // Predicated region
    $region22: #{tpu_custom_call.1} parent=1 // pred_check
      _
    $region23: #{tpu_custom_call.1} parent=1 // pred_check_branch
      %500 = sbr.rel (0) target = $region25
    $region24: #{tpu_custom_call.1} parent=1 // pred_region
      %501 = dma.done [#allocation4], 128
    $region25: #{tpu_custom_call.1} parent=1 // pred_fallthru
      _
    %502 = vsyncpa [#allocation4], 1

</llo_original>
